<compile_context>
chip_gen: v7x
topology: tpu7x:2x2x1
jax: 0.10.0
libtpu: 0.0.40
codegen_flags: <defaults>
</compile_context>

<pallas_src>
import jax
import jax.numpy as jnp
from jax.experimental import pallas as pl
from jax.experimental.pallas import tpu as pltpu


def _cdiv(a, b):
    return -(-a // b)


def _round_up(x, m):
    return ((x + m - 1) // m) * m


def _choose_tiles(B, block_b):
    """Pick (tb, nsteps) for the 1-D batch grid.

    - no input padding: the ragged last block is clamped by Pallas
    - >= 2 (even) grid steps whenever B > 8 so both v7x TensorCores run
    - tb is a multiple of 8, or equal to B when B <= 8 (full-dim exemption)
    """
    if B <= 8:
        return B, 1
    b8 = _round_up(B, 8)
    nsteps = max(2, _cdiv(b8, block_b))
    if nsteps % 2:
        nsteps += 1
    tb = _round_up(_cdiv(b8, nsteps), 8)
    nsteps = _cdiv(B, tb)
    return tb, nsteps


def attention_pool_kernel(c1_ref, c2_ref, qe_ref, qo_ref, wcat_ref, out_ref):
    """One batch tile.

    c1_ref/c2_ref: [TB, H]   CLS rows of encoder layers 1 / 2 (gathered by the
                             BlockSpec column-0 window of the [B, S*H] arrays)
    qe_ref/qo_ref: [1, H//2] even/odd entries of q (view() interleave folded)
    wcat_ref:      [H, F]    rows = [w_h[0::2]; w_h[1::2]]
    out_ref:       [TB, F]
    """
    c1 = c1_ref[...].astype(jnp.float32)          # [TB, H]
    c2 = c2_ref[...].astype(jnp.float32)
    hh = c1.shape[1] // 2                         # 384 (static, 128-aligned)

    c1a, c1b = c1[:, :hh], c1[:, hh:]             # lane slices, tile-aligned
    c2a, c2b = c2[:, :hh], c2[:, hh:]
    d1 = c1b - c1a
    d2 = c2b - c2a

    # score difference s1 - s0 of the two view() rows (softmax logits)
    sd = jnp.sum(d1 * qe_ref[...] + d2 * qo_ref[...],
                 axis=-1, keepdims=True)          # [TB, 1]
    # exact 2-element softmax: v1 = sigmoid(s1 - s0), v0 = 1 - v1
    v1 = 1.0 / (1.0 + jnp.exp(-sd))

    # pooled halves as FMAs: u = v0*c_a + v1*c_b = c_a + v1*(c_b - c_a)
    u1 = c1a + v1 * d1                            # [TB, H//2]
    u2 = c2a + v1 * d2
    u = jnp.concatenate([u1, u2], axis=-1)        # [TB, H] (128-aligned concat)

    # single K=768 MXU pass; F = 128 keeps the output lane-dense
    out = jnp.dot(u, wcat_ref[...], preferred_element_type=jnp.float32)
    out_ref[...] = out.astype(out_ref.dtype)


def attention_pooling_pallas(hs1, hs2, q, w_h, *, block_b=512):
    """hs1, hs2: [B, S, H] hidden states of encoder layers 1 and 2.

    CLS extraction ([:, 0]) happens inside the kernel's DMA window, so only
    B*H elements per layer are ever read from HBM.
    """
    assert hs1.shape == hs2.shape
    B, S, H = hs1.shape
    F = w_h.shape[1]
    assert H % 256 == 0, "need H/2 to stay 128-lane aligned"
    hh = H // 2

    # Fold PyTorch's .view(-1, 2, H) row-major reinterleave into the weights:
    #   h_view[b, l, k] = cls_{(k % 2) + 1}[b, l*(H//2) + k//2]
    qe = q[:, 0::2].astype(jnp.float32)           # [1, H//2] -> multiplies cls1
    qo = q[:, 1::2].astype(jnp.float32)           # [1, H//2] -> multiplies cls2
    w_cat = jnp.concatenate([w_h[0::2, :], w_h[1::2, :]],
                            axis=0).astype(jnp.float32)   # [H, F]

    # Free dim-merge reshape (bitcast): CLS token of row b == lanes [0, H).
    hs1_f = hs1.reshape(B, S * H)
    hs2_f = hs2.reshape(B, S * H)

    tb, nsteps = _choose_tiles(B, block_b)
    bp = tb * nsteps   # output over-allocation only; inputs stay unpadded

    out = pl.pallas_call(
        attention_pool_kernel,
        out_shape=jax.ShapeDtypeStruct((bp, F), jnp.float32),
        grid_spec=pltpu.PrefetchScalarGridSpec(
            num_scalar_prefetch=0,
            grid=(nsteps,),
            in_specs=[
                pl.BlockSpec((tb, H), lambda i: (i, 0)),   # CLS layer 1 (streamed)
                pl.BlockSpec((tb, H), lambda i: (i, 0)),   # CLS layer 2 (streamed)
                pl.BlockSpec((1, hh), lambda i: (0, 0)),   # qe    (resident)
                pl.BlockSpec((1, hh), lambda i: (0, 0)),   # qo    (resident)
                pl.BlockSpec((H, F), lambda i: (0, 0)),    # w_cat (resident)
            ],
            out_specs=pl.BlockSpec((tb, F), lambda i: (i, 0)),
        ),
        compiler_params=pltpu.CompilerParams(
            dimension_semantics=("parallel",),
            vmem_limit_bytes=48 * 1024 * 1024,
        ),
    )(hs1_f, hs2_f, qe, qo, w_cat)
    return out[:B]


def attention_pooling_forward(all_hidden_states, q, w_h,
                              num_hidden_layers=2, hidden_size=768):
    """Matches AttentionPooling.forward (eval-mode dropout).

    In production this should live under the caller's jit so the reshape and
    one-time weight permutations fuse away completely.
    """
    assert num_hidden_layers == 2
    hs1 = all_hidden_states[1]    # [B, S, H] -- CLS gather fused into kernel
    hs2 = all_hidden_states[2]
    out = attention_pooling_pallas(hs1, hs2, q, w_h)
    # dropout(0.1) -> identity in eval mode
    return out


if __name__ == "__main__":
    # Module constants (hardcoded in __init__): num_hidden_layers=2, hidden_size=768
    NUM_HIDDEN_LAYERS = 2
    HIDDEN_SIZE = 768
    HIDDENDIM_FC = 128

    BATCH = 2
    SEQ = 8
    N_LAYERS_IN = NUM_HIDDEN_LAYERS + 1   # need indices 1..2

    key = jax.random.PRNGKey(0)
    k_hs, k_q, k_w = jax.random.split(key, 3)

    # all_hidden_states: tuple of [B, S, H] tensors (like HF hidden_states)
    hs_stack = 0.1 * jax.random.normal(
        k_hs, (N_LAYERS_IN, BATCH, SEQ, HIDDEN_SIZE), dtype=jnp.float32)
    all_hidden_states = tuple(hs_stack[i] for i in range(N_LAYERS_IN))

    # deterministic parameters matching __init__ shapes
    q = (0.1 * jax.random.normal(k_q, (1, HIDDEN_SIZE))).astype(jnp.float32)
    w_h = (0.1 * jax.random.normal(
        k_w, (HIDDEN_SIZE, HIDDENDIM_FC))).astype(jnp.float32)

    out = attention_pooling_forward(all_hidden_states, q, w_h,
                                    NUM_HIDDEN_LAYERS, HIDDEN_SIZE)
    out = jax.block_until_ready(out)
    assert out.shape == (BATCH, HIDDENDIM_FC), out.shape

    # pure-JAX reference reproducing the module faithfully (stack + view path)
    cls = [all_hidden_states[i][:, 0] for i in range(1, NUM_HIDDEN_LAYERS + 1)]
    h_ref = jnp.reshape(jnp.stack(cls, axis=-1),
                        (-1, NUM_HIDDEN_LAYERS, HIDDEN_SIZE))
    scores = jnp.einsum('oh,blh->bl', q, h_ref)
    v = jax.nn.softmax(scores, axis=-1)
    pooled = jnp.einsum('bl,blh->bh', v, h_ref)
    ref = pooled @ w_h

    err = float(jnp.max(jnp.abs(out - ref)))
    assert jnp.allclose(out, ref, atol=2e-3, rtol=2e-3), err

    print("KERNEL_OK")
</pallas_src>

<mosaic_0001>
module attributes {stable_mosaic.version = 11 : i64} {
  func.func @attention_pool_kernel(%arg0: i32, %arg1: memref<2x768xf32, #tpu.memory_space<vmem>>, %arg2: memref<2x768xf32, #tpu.memory_space<vmem>>, %arg3: memref<1x384xf32, #tpu.memory_space<vmem>>, %arg4: memref<1x384xf32, #tpu.memory_space<vmem>>, %arg5: memref<768x128xf32, #tpu.memory_space<vmem>>, %arg6: memref<2x128xf32, #tpu.memory_space<vmem>>) attributes {dimension_semantics = [#tpu.dimension_semantics<parallel>], iteration_bounds = array<i64: 1>, scalar_prefetch = 0 : i64, scratch_operands = 0 : i64, tpu.core_type = #tpu.core_type<tc>, window_params = [{transform_indices = @transform_0, window_bounds = array<i64: 2, 768>}, {transform_indices = @transform_1, window_bounds = array<i64: 2, 768>}, {pipeline_mode = #tpu.pipeline_mode<synchronous>, transform_indices = @transform_2, window_bounds = array<i64: 1, 384>}, {pipeline_mode = #tpu.pipeline_mode<synchronous>, transform_indices = @transform_3, window_bounds = array<i64: 1, 384>}, {pipeline_mode = #tpu.pipeline_mode<synchronous>, transform_indices = @transform_4, window_bounds = array<i64: 768, 128>}, {transform_indices = @transform_5, window_bounds = array<i64: 2, 128>}]} {
    %c0 = arith.constant 0 : index
    %c0_0 = arith.constant 0 : index
    %0 = vector.load %arg1[%c0, %c0_0] : memref<2x768xf32, #tpu.memory_space<vmem>>, vector<2x768xf32>
    %c0_1 = arith.constant 0 : index
    %c0_2 = arith.constant 0 : index
    %1 = vector.load %arg2[%c0_1, %c0_2] : memref<2x768xf32, #tpu.memory_space<vmem>>, vector<2x768xf32>
    %2 = vector.extract_strided_slice %0 {offsets = [0, 0], sizes = [2, 384], strides = [1, 1]} : vector<2x768xf32> to vector<2x384xf32>
    %3 = vector.extract_strided_slice %0 {offsets = [0, 384], sizes = [2, 384], strides = [1, 1]} : vector<2x768xf32> to vector<2x384xf32>
    %4 = vector.extract_strided_slice %1 {offsets = [0, 0], sizes = [2, 384], strides = [1, 1]} : vector<2x768xf32> to vector<2x384xf32>
    %5 = vector.extract_strided_slice %1 {offsets = [0, 384], sizes = [2, 384], strides = [1, 1]} : vector<2x768xf32> to vector<2x384xf32>
    %6 = arith.subf %3, %2 : vector<2x384xf32>
    %7 = arith.subf %5, %4 : vector<2x384xf32>
    %c0_3 = arith.constant 0 : index
    %c0_4 = arith.constant 0 : index
    %8 = vector.load %arg3[%c0_3, %c0_4] : memref<1x384xf32, #tpu.memory_space<vmem>>, vector<1x384xf32>
    %9 = vector.broadcast %8 : vector<1x384xf32> to vector<2x384xf32>
    %10 = arith.mulf %6, %9 : vector<2x384xf32>
    %c0_5 = arith.constant 0 : index
    %c0_6 = arith.constant 0 : index
    %11 = vector.load %arg4[%c0_5, %c0_6] : memref<1x384xf32, #tpu.memory_space<vmem>>, vector<1x384xf32>
    %12 = vector.broadcast %11 : vector<1x384xf32> to vector<2x384xf32>
    %13 = arith.mulf %7, %12 : vector<2x384xf32>
    %14 = arith.addf %10, %13 : vector<2x384xf32>
    %cst = arith.constant dense<0.000000e+00> : vector<2xf32>
    %15 = vector.multi_reduction <add>, %14, %cst [1] : vector<2x384xf32> to vector<2xf32>
    %16 = vector.shape_cast %15 : vector<2xf32> to vector<2x1xf32>
    %cst_7 = arith.constant 0.000000e+00 : f32
    %17 = vector.broadcast %cst_7 : f32 to vector<2x1xf32>
    %18 = arith.subf %17, %16 : vector<2x1xf32>
    %19 = math.exp %18 : vector<2x1xf32>
    %cst_8 = arith.constant 1.000000e+00 : f32
    %20 = vector.broadcast %cst_8 : f32 to vector<2x1xf32>
    %21 = arith.addf %20, %19 : vector<2x1xf32>
    %cst_9 = arith.constant 1.000000e+00 : f32
    %22 = vector.broadcast %cst_9 : f32 to vector<2x1xf32>
    %23 = arith.divf %22, %21 : vector<2x1xf32>
    %24 = vector.broadcast %23 : vector<2x1xf32> to vector<2x384xf32>
    %25 = arith.mulf %24, %6 : vector<2x384xf32>
    %26 = arith.addf %2, %25 : vector<2x384xf32>
    %27 = vector.broadcast %23 : vector<2x1xf32> to vector<2x384xf32>
    %28 = arith.mulf %27, %7 : vector<2x384xf32>
    %29 = arith.addf %4, %28 : vector<2x384xf32>
    %30 = tpu.concatenate %26, %29 in 1 : vector<2x384xf32>, vector<2x384xf32> -> vector<2x768xf32>
    %c0_10 = arith.constant 0 : index
    %c0_11 = arith.constant 0 : index
    %31 = vector.load %arg5[%c0_10, %c0_11] : memref<768x128xf32, #tpu.memory_space<vmem>>, vector<768x128xf32>
    %cst_12 = arith.constant dense<0.000000e+00> : vector<2x128xf32>
    %32 = tpu.matmul %30, %31, %cst_12 {dimension_numbers = #tpu.dot_dimension_numbers<[1], [0], [0], [1], [0, 0, 1, 1], [], []>} : vector<2x768xf32>, vector<768x128xf32>, vector<2x128xf32> -> vector<2x128xf32>
    %c0_13 = arith.constant 0 : index
    %c0_14 = arith.constant 0 : index
    %33 = vector.load %arg6[%c0_13, %c0_14] : memref<2x128xf32, #tpu.memory_space<vmem>>, vector<2x128xf32>
    tpu.vector_store %arg6[%c0_13, %c0_14], %32 {strides = array<i32>} : memref<2x128xf32, #tpu.memory_space<vmem>>, vector<2x128xf32>,
    return
  }
  func.func @transform_0(%arg0: i32) -> (i32, i32) {
    %c0_i32 = arith.constant 0 : i32
    %c0_i32_0 = arith.constant 0 : i32
    return %arg0, %c0_i32 : i32, i32
  }
  func.func @transform_1(%arg0: i32) -> (i32, i32) {
    %c0_i32 = arith.constant 0 : i32
    %c0_i32_0 = arith.constant 0 : i32
    return %arg0, %c0_i32 : i32, i32
  }
  func.func @transform_2(%arg0: i32) -> (i32, i32) {
    %c0_i32 = arith.constant 0 : i32
    %c0_i32_0 = arith.constant 0 : i32
    %c0_i32_1 = arith.constant 0 : i32
    return %c0_i32, %c0_i32_0 : i32, i32
  }
  func.func @transform_3(%arg0: i32) -> (i32, i32) {
    %c0_i32 = arith.constant 0 : i32
    %c0_i32_0 = arith.constant 0 : i32
    %c0_i32_1 = arith.constant 0 : i32
    return %c0_i32, %c0_i32_0 : i32, i32
  }
  func.func @transform_4(%arg0: i32) -> (i32, i32) {
    %c0_i32 = arith.constant 0 : i32
    %c0_i32_0 = arith.constant 0 : i32
    %c0_i32_1 = arith.constant 0 : i32
    return %c0_i32, %c0_i32_0 : i32, i32
  }
  func.func @transform_5(%arg0: i32) -> (i32, i32) {
    %c0_i32 = arith.constant 0 : i32
    %c0_i32_0 = arith.constant 0 : i32
    return %arg0, %c0_i32 : i32, i32
  }
}

</mosaic_0001>

<llo_original>
// kernel: tpu_custom_call.1
$region0: #{tpu_custom_call.1}
  #allocation0 [shape = 'u32[]', space=smem, size = 0x4, offset = 0x4, fixed_abs, tag = 'smem constant byte address 0x4 - core index']
  #allocation1 [shape = 'u32[144,128]{1,0:T(1,128)}', space=vmem, size = 0x12000, scoped, tag = 'internal scratch']
  %s0 = inlined_call_operand.hbm [shape: f32[2,6144], index: 0, kind: input, shape index: {}]
  %s1 = inlined_call_operand.hbm [shape: f32[2,6144], index: 1, kind: input, shape index: {}]
  %s2 = inlined_call_operand.vmem [shape: f32[1,384], index: 2, kind: input, shape index: {}]
  %s3 = inlined_call_operand.vmem [shape: f32[1,384], index: 3, kind: input, shape index: {}]
  %s4 = inlined_call_operand.hbm [shape: f32[768,128], index: 4, kind: input, shape index: {}]
  %s5 = inlined_call_operand.hbm [shape: f32[2,128], index: 5, kind: output, shape index: {}]
  %s6 = sld [smem:[#allocation0]]
  $region42: #{tpu_custom_call.1} parent=0
    _
  %s8 = ssub.s32 1, %s6
  %s9 = scalar_select 0, %s8, %s6
  $region1: #{tpu_custom_call.1} parent=0
    #allocation2 [shape = 'u8[6144]{0}', space=vmem, size = 0x1800, scoped, tag = 'input window, operand 0, single buffered']
    #allocation3 [shape = 's32[1]{0}', space=sflag, size = 0x4, scoped, tag = 'scoped memory for tpu_custom_call.1']
    #allocation4 [shape = 's32[1]{0}', space=sflag, size = 0x4, scoped, tag = 'scoped memory for tpu_custom_call.1']
    #allocation5 [shape = 'u8[6144]{0}', space=vmem, size = 0x1800, scoped, tag = 'input window, operand 1, single buffered']
    #allocation6 [shape = 's32[1]{0}', space=sflag, size = 0x4, scoped, tag = 'scoped memory for tpu_custom_call.1']
    #allocation7 [shape = 'u8[393216]{0}', space=vmem, size = 0x60000, scoped, tag = 'input window, operand 4, single buffered']
    #allocation8 [shape = 'u8[1024]{0}', space=vmem, size = 0x400, scoped, tag = 'output window, operand 0, single buffered']
    %10 = vsyncpa [#allocation3], 0
    %11 = vsyncpa [#allocation6], 0
    %12 = vsyncpa [#allocation4], 0
    // Predicated region
    $region2: #{tpu_custom_call.1} parent=1 // pred_check
      _
    $region3: #{tpu_custom_call.1} parent=1 // pred_check_branch
      %14 = sbr.rel (0) target = $region5
    $region4: #{tpu_custom_call.1} parent=1 // pred_region
      %s16 = ssub.s32 192, 192
      %17 = vsyncadd [#allocation3], %s16
      %s19 = sshll.u32 [#allocation2], 4
      %s20 = int_to_ptr.vmem [resolvable:$true] %s19
      %22 = dma.hbm_to_vmem [thread:$0]  %s0, 192, %s20, [#allocation3]
    $region5: #{tpu_custom_call.1} parent=1 // pred_fallthru
      _
    // Predicated region
    $region6: #{tpu_custom_call.1} parent=1 // pred_check
      _
    $region7: #{tpu_custom_call.1} parent=1 // pred_check_branch
      %24 = sbr.rel (0) target = $region9
    $region8: #{tpu_custom_call.1} parent=1 // pred_region
      %s26 = ssub.s32 192, 192
      %27 = vsyncadd [#allocation6], %s26
      %s29 = sshll.u32 [#allocation5], 4
      %s30 = int_to_ptr.vmem [resolvable:$true] %s29
      %32 = dma.hbm_to_vmem [thread:$0]  %s1, 192, %s30, [#allocation6]
    $region9: #{tpu_custom_call.1} parent=1 // pred_fallthru
      _
    // Predicated region
    $region10: #{tpu_custom_call.1} parent=1 // pred_check
      _
    $region11: #{tpu_custom_call.1} parent=1 // pred_check_branch
      %34 = sbr.rel (0) target = $region13
    $region12: #{tpu_custom_call.1} parent=1 // pred_region
      _
    $region13: #{tpu_custom_call.1} parent=1 // pred_fallthru
      _
    // Predicated region
    $region14: #{tpu_custom_call.1} parent=1 // pred_check
      _
    $region15: #{tpu_custom_call.1} parent=1 // pred_check_branch
      %36 = sbr.rel (0) target = $region17
    $region16: #{tpu_custom_call.1} parent=1 // pred_region
      _
    $region17: #{tpu_custom_call.1} parent=1 // pred_fallthru
      _
    // Predicated region
    $region18: #{tpu_custom_call.1} parent=1 // pred_check
      _
    $region19: #{tpu_custom_call.1} parent=1 // pred_check_branch
      %38 = sbr.rel (0) target = $region21
    $region20: #{tpu_custom_call.1} parent=1 // pred_region
      %s40 = ssub.s32 12288, 12288
      %41 = vsyncadd [#allocation6], %s40
      %s42 = sshll.u32 [#allocation7], 4
      %s43 = int_to_ptr.vmem [resolvable:$true] %s42
      %48 = dma.hbm_to_vmem [thread:$0]  %s4, 12288, %s43, [#allocation6], 128, 128, 8
    $region21: #{tpu_custom_call.1} parent=1 // pred_fallthru
      _
    // Predicated region
    $region22: #{tpu_custom_call.1} parent=1 // pred_check
      _
    $region23: #{tpu_custom_call.1} parent=1 // pred_check_branch
      %50 = sbr.rel (0) target = $region25
    $region24: #{tpu_custom_call.1} parent=1 // pred_region
      %51 = dma.done [#allocation3], 192
    $region25: #{tpu_custom_call.1} parent=1 // pred_fallthru
      _
    // Predicated region
    $region26: #{tpu_custom_call.1} parent=1 // pred_check
      _
    $region27: #{tpu_custom_call.1} parent=1 // pred_check_branch
      %53 = sbr.rel (0) target = $region29
    $region28: #{tpu_custom_call.1} parent=1 // pred_region
      %54 = dma.done [#allocation6], 192
    $region29: #{tpu_custom_call.1} parent=1 // pred_fallthru
      _
    // Predicated region
    $region30: #{tpu_custom_call.1} parent=1 // pred_check
      _
    $region31: #{tpu_custom_call.1} parent=1 // pred_check_branch
      %56 = sbr.rel (0) target = $region33
    $region32: #{tpu_custom_call.1} parent=1 // pred_region
      %57 = dma.done [#allocation6], 12288
    $region33: #{tpu_custom_call.1} parent=1 // pred_fallthru
      _
    %v58 = vld [vmem:[#allocation2] sm:$0xff]
    %v59 = vld [vmem:[#allocation2 + $0x8] sm:$0xf]
    %v60 = vld [vmem:[#allocation5] sm:$0xff]
    %v61 = vld [vmem:[#allocation5 + $0x8] sm:$0xf]
    %v64 = vrot.slane %v58, 6
    %v65 = vrot.slane %v59, 6
    %vm66 = vcmask 1041408
    %v67 = vsel %vm66, %v64, %v65
    %v69 = vsub.f32 %v67, %v58
    %v72 = vrot.slane %v60, 6
    %v73 = vrot.slane %v61, 6
    %v74 = vsel %vm66, %v72, %v73
    %v76 = vsub.f32 %v74, %v60
    %v77 = vld [vmem:[%s2] sm:$0x7]
    %v79 = vlaneseq
    %v80 = vshrl.u32 %v79, 7
    %v81 = vsub.s32 0, %v80
    %v82 = vrot.slane %v77, %v81
    %v83 = vlaneseq
    %v84 = vshrl.u32 %v83, 7
    %v85 = vsub.s32 1, %v84
    %v86 = vrot.slane %v77, %v85
    %v87 = vlaneseq
    %v88 = vshrl.u32 %v87, 7
    %v89 = vsub.s32 2, %v88
    %v90 = vrot.slane %v77, %v89
    %v91 = vcombine.low %v82, %v86
    %v93 = vunpack.c.l.s4 1983009808
    %v94 = vunpack.c.0.s8 %v93
    %v95 = vlaneseq
    %v96 = vshrl.u32 %v95, 7
    %v97 = vsub.s32 %v94, %v96
    %v98 = vrot.slane %v91, %v97
    %v100 = vunpack.c.l.s4 1983009808
    %v101 = vunpack.c.0.s8 %v100
    %v102 = vlaneseq
    %v103 = vshrl.u32 %v102, 7
    %v104 = vsub.s32 %v101, %v103
    %v105 = vrot.slane %v90, %v104
    %v106 = vcombine.low %v98, %v105
    %v108 = vmul.f32 %v69, %v106
    %v109 = vld [vmem:[%s3] sm:$0x7]
    %v111 = vlaneseq
    %v112 = vshrl.u32 %v111, 7
    %v113 = vsub.s32 0, %v112
    %v114 = vrot.slane %v109, %v113
    %v115 = vlaneseq
    %v116 = vshrl.u32 %v115, 7
    %v117 = vsub.s32 1, %v116
    %v118 = vrot.slane %v109, %v117
    %v119 = vlaneseq
    %v120 = vshrl.u32 %v119, 7
    %v121 = vsub.s32 2, %v120
    %v122 = vrot.slane %v109, %v121
    %v123 = vcombine.low %v114, %v118
    %v125 = vunpack.c.l.s4 1983009808
    %v126 = vunpack.c.0.s8 %v125
    %v127 = vlaneseq
    %v128 = vshrl.u32 %v127, 7
    %v129 = vsub.s32 %v126, %v128
    %v130 = vrot.slane %v123, %v129
    %v132 = vunpack.c.l.s4 1983009808
    %v133 = vunpack.c.0.s8 %v132
    %v134 = vlaneseq
    %v135 = vshrl.u32 %v134, 7
    %v136 = vsub.s32 %v133, %v135
    %v137 = vrot.slane %v122, %v136
    %v138 = vcombine.low %v130, %v137
    %v140 = vmul.f32 %v76, %v138
    %v141 = vadd.f32 %v108, %v140
    %v143 = vcombine.high %v141, %v141
    %v145 = vunpack.c.l.s4 1983009808
    %v146 = vunpack.c.0.s8 %v145
    %v147 = vlaneseq
    %v148 = vshrl.u32 %v147, 7
    %v149 = vsub.s32 %v146, %v148
    %v150 = vrot.slane %v141, %v149
    %v152 = vunpack.c.l.s4 1983009808
    %v153 = vunpack.c.0.s8 %v152
    %v154 = vlaneseq
    %v155 = vshrl.u32 %v154, 7
    %v156 = vsub.s32 %v153, %v155
    %v157 = vrot.slane %v143, %v156
    %v158 = vcombine.high %v150, %v150
    %v162 = vsel %vm66, %v150, 0.0
    %v163 = vsel %vm66, %v158, 0.0
    %v164 = vadd.f32 %v162, %v163
    %v165 = vsel %vm66, %v157, 0.0
    %v166 = vadd.f32 %v164, %v165
    %167 = vadd.xlane.f32.xlu0 %v166
    %v168 = vpop.xlane.xlu0 %167
    %v169 = vsub.f32 0.0, %v168
    %v170 = vmul.f32 %v169, 1.442695
    %v171 = vpow.pop %v170
    %v172 = vadd.f32 %v171, 1.0
    %v173 = vrcp.pop %v172
    %v174 = vmul.f32 1.0, %v173
    %v176 = vcombine.high %v69, %v69
    %v178 = vunpack.c.l.s4 1983009808
    %v179 = vunpack.c.0.s8 %v178
    %v180 = vlaneseq
    %v181 = vshrl.u32 %v180, 7
    %v182 = vsub.s32 %v179, %v181
    %v183 = vrot.slane %v69, %v182
    %v185 = vunpack.c.l.s4 1983009808
    %v186 = vunpack.c.0.s8 %v185
    %v187 = vlaneseq
    %v188 = vshrl.u32 %v187, 7
    %v189 = vsub.s32 %v186, %v188
    %v190 = vrot.slane %v176, %v189
    %v191 = vcombine.high %v183, %v183
    %v195 = vmul.f32 %v174, %v183
    %v196 = vmul.f32 %v174, %v191
    %v197 = vmul.f32 %v174, %v190
    %v201 = vcombine.low %v195, %v196
    %v203 = vunpack.c.l.s4 1983009808
    %v204 = vunpack.c.0.s8 %v203
    %v205 = vlaneseq
    %v206 = vshrl.u32 %v205, 7
    %v207 = vsub.s32 %v204, %v206
    %v208 = vrot.slane %v201, %v207
    %v210 = vunpack.c.l.s4 1983009808
    %v211 = vunpack.c.0.s8 %v210
    %v212 = vlaneseq
    %v213 = vshrl.u32 %v212, 7
    %v214 = vsub.s32 %v211, %v213
    %v215 = vrot.slane %v197, %v214
    %v216 = vcombine.low %v208, %v215
    %v218 = vadd.f32 %v58, %v216
    %v220 = vcombine.high %v76, %v76
    %v222 = vunpack.c.l.s4 1983009808
    %v223 = vunpack.c.0.s8 %v222
    %v224 = vlaneseq
    %v225 = vshrl.u32 %v224, 7
    %v226 = vsub.s32 %v223, %v225
    %v227 = vrot.slane %v76, %v226
    %v229 = vunpack.c.l.s4 1983009808
    %v230 = vunpack.c.0.s8 %v229
    %v231 = vlaneseq
    %v232 = vshrl.u32 %v231, 7
    %v233 = vsub.s32 %v230, %v232
    %v234 = vrot.slane %v220, %v233
    %v235 = vcombine.high %v227, %v227
    %v239 = vmul.f32 %v174, %v227
    %v240 = vmul.f32 %v174, %v235
    %v241 = vmul.f32 %v174, %v234
    %v245 = vcombine.low %v239, %v240
    %v247 = vunpack.c.l.s4 1983009808
    %v248 = vunpack.c.0.s8 %v247
    %v249 = vlaneseq
    %v250 = vshrl.u32 %v249, 7
    %v251 = vsub.s32 %v248, %v250
    %v252 = vrot.slane %v245, %v251
    %v254 = vunpack.c.l.s4 1983009808
    %v255 = vunpack.c.0.s8 %v254
    %v256 = vlaneseq
    %v257 = vshrl.u32 %v256, 7
    %v258 = vsub.s32 %v255, %v257
    %v259 = vrot.slane %v241, %v258
    %v260 = vcombine.low %v252, %v259
    %v262 = vadd.f32 %v60, %v260
    %v264 = vcombine.high %v218, %v218
    %v266 = vunpack.c.l.s4 1983009808
    %v267 = vunpack.c.0.s8 %v266
    %v268 = vlaneseq
    %v269 = vshrl.u32 %v268, 7
    %v270 = vsub.s32 %v267, %v269
    %v271 = vrot.slane %v218, %v270
    %v273 = vunpack.c.l.s4 1983009808
    %v274 = vunpack.c.0.s8 %v273
    %v275 = vlaneseq
    %v276 = vshrl.u32 %v275, 7
    %v277 = vsub.s32 %v274, %v276
    %v278 = vrot.slane %v264, %v277
    %v279 = vcombine.high %v271, %v271
    %v284 = vcombine.high %v262, %v262
    %v286 = vunpack.c.l.s4 1983009808
    %v287 = vunpack.c.0.s8 %v286
    %v288 = vlaneseq
    %v289 = vshrl.u32 %v288, 7
    %v290 = vsub.s32 %v287, %v289
    %v291 = vrot.slane %v262, %v290
    %v293 = vunpack.c.l.s4 1983009808
    %v294 = vunpack.c.0.s8 %v293
    %v295 = vlaneseq
    %v296 = vshrl.u32 %v295, 7
    %v297 = vsub.s32 %v294, %v296
    %v298 = vrot.slane %v284, %v297
    %v299 = vcombine.high %v291, %v291
    %v303 = vld [vmem:[#allocation7] sm:$0xff]
    %v304 = vld [vmem:[#allocation7 + $0x8] sm:$0xff]
    %v305 = vld [vmem:[#allocation7 + $0x10] sm:$0xff]
    %v306 = vld [vmem:[#allocation7 + $0x18] sm:$0xff]
    %v307 = vld [vmem:[#allocation7 + $0x20] sm:$0xff]
    %v308 = vld [vmem:[#allocation7 + $0x28] sm:$0xff]
    %v309 = vld [vmem:[#allocation7 + $0x30] sm:$0xff]
    %v310 = vld [vmem:[#allocation7 + $0x38] sm:$0xff]
    %v311 = vld [vmem:[#allocation7 + $0x40] sm:$0xff]
    %v312 = vld [vmem:[#allocation7 + $0x48] sm:$0xff]
    %v313 = vld [vmem:[#allocation7 + $0x50] sm:$0xff]
    %v314 = vld [vmem:[#allocation7 + $0x58] sm:$0xff]
    %v315 = vld [vmem:[#allocation7 + $0x60] sm:$0xff]
    %v316 = vld [vmem:[#allocation7 + $0x68] sm:$0xff]
    %v317 = vld [vmem:[#allocation7 + $0x70] sm:$0xff]
    %v318 = vld [vmem:[#allocation7 + $0x78] sm:$0xff]
    %v319 = vld [vmem:[#allocation7 + $0x80] sm:$0xff]
    %v320 = vld [vmem:[#allocation7 + $0x88] sm:$0xff]
    %v321 = vld [vmem:[#allocation7 + $0x90] sm:$0xff]
    %v322 = vld [vmem:[#allocation7 + $0x98] sm:$0xff]
    %v323 = vld [vmem:[#allocation7 + $0xa0] sm:$0xff]
    %v324 = vld [vmem:[#allocation7 + $0xa8] sm:$0xff]
    %v325 = vld [vmem:[#allocation7 + $0xb0] sm:$0xff]
    %v326 = vld [vmem:[#allocation7 + $0xb8] sm:$0xff]
    %v327 = vld [vmem:[#allocation7 + $0xc0] sm:$0xff]
    %v328 = vld [vmem:[#allocation7 + $0xc8] sm:$0xff]
    %v329 = vld [vmem:[#allocation7 + $0xd0] sm:$0xff]
    %v330 = vld [vmem:[#allocation7 + $0xd8] sm:$0xff]
    %v331 = vld [vmem:[#allocation7 + $0xe0] sm:$0xff]
    %v332 = vld [vmem:[#allocation7 + $0xe8] sm:$0xff]
    %v333 = vld [vmem:[#allocation7 + $0xf0] sm:$0xff]
    %v334 = vld [vmem:[#allocation7 + $0xf8] sm:$0xff]
    %v335 = vld [vmem:[#allocation7 + $0x100] sm:$0xff]
    %v336 = vld [vmem:[#allocation7 + $0x108] sm:$0xff]
    %v337 = vld [vmem:[#allocation7 + $0x110] sm:$0xff]
    %v338 = vld [vmem:[#allocation7 + $0x118] sm:$0xff]
    %v339 = vld [vmem:[#allocation7 + $0x120] sm:$0xff]
    %v340 = vld [vmem:[#allocation7 + $0x128] sm:$0xff]
    %v341 = vld [vmem:[#allocation7 + $0x130] sm:$0xff]
    %v342 = vld [vmem:[#allocation7 + $0x138] sm:$0xff]
    %v343 = vld [vmem:[#allocation7 + $0x140] sm:$0xff]
    %v344 = vld [vmem:[#allocation7 + $0x148] sm:$0xff]
    %v345 = vld [vmem:[#allocation7 + $0x150] sm:$0xff]
    %v346 = vld [vmem:[#allocation7 + $0x158] sm:$0xff]
    %v347 = vld [vmem:[#allocation7 + $0x160] sm:$0xff]
    %v348 = vld [vmem:[#allocation7 + $0x168] sm:$0xff]
    %v349 = vld [vmem:[#allocation7 + $0x170] sm:$0xff]
    %v350 = vld [vmem:[#allocation7 + $0x178] sm:$0xff]
    %v351 = vld [vmem:[#allocation7 + $0x180] sm:$0xff]
    %v352 = vld [vmem:[#allocation7 + $0x188] sm:$0xff]
    %v353 = vld [vmem:[#allocation7 + $0x190] sm:$0xff]
    %v354 = vld [vmem:[#allocation7 + $0x198] sm:$0xff]
    %v355 = vld [vmem:[#allocation7 + $0x1a0] sm:$0xff]
    %v356 = vld [vmem:[#allocation7 + $0x1a8] sm:$0xff]
    %v357 = vld [vmem:[#allocation7 + $0x1b0] sm:$0xff]
    %v358 = vld [vmem:[#allocation7 + $0x1b8] sm:$0xff]
    %v359 = vld [vmem:[#allocation7 + $0x1c0] sm:$0xff]
    %v360 = vld [vmem:[#allocation7 + $0x1c8] sm:$0xff]
    %v361 = vld [vmem:[#allocation7 + $0x1d0] sm:$0xff]
    %v362 = vld [vmem:[#allocation7 + $0x1d8] sm:$0xff]
    %v363 = vld [vmem:[#allocation7 + $0x1e0] sm:$0xff]
    %v364 = vld [vmem:[#allocation7 + $0x1e8] sm:$0xff]
    %v365 = vld [vmem:[#allocation7 + $0x1f0] sm:$0xff]
    %v366 = vld [vmem:[#allocation7 + $0x1f8] sm:$0xff]
    %v367 = vld [vmem:[#allocation7 + $0x200] sm:$0xff]
    %v368 = vld [vmem:[#allocation7 + $0x208] sm:$0xff]
    %v369 = vld [vmem:[#allocation7 + $0x210] sm:$0xff]
    %v370 = vld [vmem:[#allocation7 + $0x218] sm:$0xff]
    %v371 = vld [vmem:[#allocation7 + $0x220] sm:$0xff]
    %v372 = vld [vmem:[#allocation7 + $0x228] sm:$0xff]
    %v373 = vld [vmem:[#allocation7 + $0x230] sm:$0xff]
    %v374 = vld [vmem:[#allocation7 + $0x238] sm:$0xff]
    %v375 = vld [vmem:[#allocation7 + $0x240] sm:$0xff]
    %v376 = vld [vmem:[#allocation7 + $0x248] sm:$0xff]
    %v377 = vld [vmem:[#allocation7 + $0x250] sm:$0xff]
    %v378 = vld [vmem:[#allocation7 + $0x258] sm:$0xff]
    %v379 = vld [vmem:[#allocation7 + $0x260] sm:$0xff]
    %v380 = vld [vmem:[#allocation7 + $0x268] sm:$0xff]
    %v381 = vld [vmem:[#allocation7 + $0x270] sm:$0xff]
    %v382 = vld [vmem:[#allocation7 + $0x278] sm:$0xff]
    %v383 = vld [vmem:[#allocation7 + $0x280] sm:$0xff]
    %v384 = vld [vmem:[#allocation7 + $0x288] sm:$0xff]
    %v385 = vld [vmem:[#allocation7 + $0x290] sm:$0xff]
    %v386 = vld [vmem:[#allocation7 + $0x298] sm:$0xff]
    %v387 = vld [vmem:[#allocation7 + $0x2a0] sm:$0xff]
    %v388 = vld [vmem:[#allocation7 + $0x2a8] sm:$0xff]
    %v389 = vld [vmem:[#allocation7 + $0x2b0] sm:$0xff]
    %v390 = vld [vmem:[#allocation7 + $0x2b8] sm:$0xff]
    %v391 = vld [vmem:[#allocation7 + $0x2c0] sm:$0xff]
    %v392 = vld [vmem:[#allocation7 + $0x2c8] sm:$0xff]
    %v393 = vld [vmem:[#allocation7 + $0x2d0] sm:$0xff]
    %v394 = vld [vmem:[#allocation7 + $0x2d8] sm:$0xff]
    %v395 = vld [vmem:[#allocation7 + $0x2e0] sm:$0xff]
    %v396 = vld [vmem:[#allocation7 + $0x2e8] sm:$0xff]
    %v397 = vld [vmem:[#allocation7 + $0x2f0] sm:$0xff]
    %v398 = vld [vmem:[#allocation7 + $0x2f8] sm:$0xff]
    %399 = vmatprep.subr.mxu0 0.0
    %400 = vmatpush1.msra.mxu0 %v303
    %401 = vmatprep.subr.mxu0 0.0
    %402 = vmatpush1.msra.mxu0 %v304
    %403 = vmatprep.subr.mxu0 0.0
    %404 = vmatpush1.msra.mxu0 %v305
    %405 = vmatprep.subr.mxu0 0.0
    %406 = vmatpush1.msra.mxu0 %v306
    %407 = vmatprep.subr.mxu0 0.0
    %408 = vmatpush1.msra.mxu0 %v307
    %409 = vmatprep.subr.mxu0 0.0
    %410 = vmatpush1.msra.mxu0 %v308
    %411 = vmatprep.subr.mxu0 0.0
    %412 = vmatpush1.msra.mxu0 %v309
    %413 = vmatprep.subr.mxu0 0.0
    %414 = vmatpush1.msra.mxu0 %v310
    %415 = vmatprep.subr.mxu0 0.0
    %416 = vmatpush1.msra.mxu0 %v311
    %417 = vmatprep.subr.mxu0 0.0
    %418 = vmatpush1.msra.mxu0 %v312
    %419 = vmatprep.subr.mxu0 0.0
    %420 = vmatpush1.msra.mxu0 %v313
    %421 = vmatprep.subr.mxu0 0.0
    %422 = vmatpush1.msra.mxu0 %v314
    %423 = vmatprep.subr.mxu0 0.0
    %424 = vmatpush1.msra.mxu0 %v315
    %425 = vmatprep.subr.mxu0 0.0
    %426 = vmatpush1.msra.mxu0 %v316
    %427 = vmatprep.subr.mxu0 0.0
    %428 = vmatpush1.msra.mxu0 %v317
    %429 = vmatprep.subr.mxu0 0.0
    %430 = vmatpush1.msra.mxu0 %v318
    %431 = vmatprep.subr.mxu0 0.0
    %432 = vmatpush1.msra.mxu0 %v319
    %433 = vmatprep.subr.mxu0 0.0
    %434 = vmatpush1.msra.mxu0 %v320
    %435 = vmatprep.subr.mxu0 0.0
    %436 = vmatpush1.msra.mxu0 %v321
    %437 = vmatprep.subr.mxu0 0.0
    %438 = vmatpush1.msra.mxu0 %v322
    %439 = vmatprep.subr.mxu0 0.0
    %440 = vmatpush1.msra.mxu0 %v323
    %441 = vmatprep.subr.mxu0 0.0
    %442 = vmatpush1.msra.mxu0 %v324
    %443 = vmatprep.subr.mxu0 0.0
    %444 = vmatpush1.msra.mxu0 %v325
    %445 = vmatprep.subr.mxu0 0.0
    %446 = vmatpush1.msra.mxu0 %v326
    %447 = vmatprep.subr.mxu0 0.0
    %448 = vmatpush1.msra.mxu0 %v327
    %449 = vmatprep.subr.mxu0 0.0
    %450 = vmatpush1.msra.mxu0 %v328
    %451 = vmatprep.subr.mxu0 0.0
    %452 = vmatpush1.msra.mxu0 %v329
    %453 = vmatprep.subr.mxu0 0.0
    %454 = vmatpush1.msra.mxu0 %v330
    %455 = vmatprep.subr.mxu0 0.0
    %456 = vmatpush1.msra.mxu0 %v331
    %457 = vmatprep.subr.mxu0 0.0
    %458 = vmatpush1.msra.mxu0 %v332
    %459 = vmatprep.subr.mxu0 0.0
    %460 = vmatpush1.msra.mxu0 %v333
    %461 = vmatprep.subr.mxu0 0.0
    %462 = vmatpush1.msra.mxu0 %v334
    %463 = vmatprep.mubr.f32.mxu0 %v279
    %464 = vmatmul.mubr.f32.gmra.mrb[0].mxu0 %v271
    %v465 = vpop.f32.mrb[0].mxu0
    %v466 = vadd.f32 0.0, %v465
    %v467 = vpop.f32.mrb[0].mxu0
    %468 = vdwg.mxu0
    %469 = vmatprep.subr.mxu0 0.0
    %470 = vmatpush1.msra.mxu0 %v335
    %471 = vmatprep.subr.mxu0 0.0
    %472 = vmatpush1.msra.mxu0 %v336
    %473 = vmatprep.subr.mxu0 0.0
    %474 = vmatpush1.msra.mxu0 %v337
    %475 = vmatprep.subr.mxu0 0.0
    %476 = vmatpush1.msra.mxu0 %v338
    %477 = vmatprep.subr.mxu0 0.0
    %478 = vmatpush1.msra.mxu0 %v339
    %479 = vmatprep.subr.mxu0 0.0
    %480 = vmatpush1.msra.mxu0 %v340
    %481 = vmatprep.subr.mxu0 0.0
    %482 = vmatpush1.msra.mxu0 %v341
    %483 = vmatprep.subr.mxu0 0.0
    %484 = vmatpush1.msra.mxu0 %v342
    %485 = vmatprep.subr.mxu0 0.0
    %486 = vmatpush1.msra.mxu0 %v343
    %487 = vmatprep.subr.mxu0 0.0
    %488 = vmatpush1.msra.mxu0 %v344
    %489 = vmatprep.subr.mxu0 0.0
    %490 = vmatpush1.msra.mxu0 %v345
    %491 = vmatprep.subr.mxu0 0.0
    %492 = vmatpush1.msra.mxu0 %v346
    %493 = vmatprep.subr.mxu0 0.0
    %494 = vmatpush1.msra.mxu0 %v347
    %495 = vmatprep.subr.mxu0 0.0
    %496 = vmatpush1.msra.mxu0 %v348
    %497 = vmatprep.subr.mxu0 0.0
    %498 = vmatpush1.msra.mxu0 %v349
    %499 = vmatprep.subr.mxu0 0.0
    %500 = vmatpush1.msra.mxu0 %v350
    %501 = vmatprep.subr.mxu0 0.0
    %502 = vmatpush1.msra.mxu0 %v351
    %503 = vmatprep.subr.mxu0 0.0
    %504 = vmatpush1.msra.mxu0 %v352
    %505 = vmatprep.subr.mxu0 0.0
    %506 = vmatpush1.msra.mxu0 %v353
    %507 = vmatprep.subr.mxu0 0.0
    %508 = vmatpush1.msra.mxu0 %v354
    %509 = vmatprep.subr.mxu0 0.0
    %510 = vmatpush1.msra.mxu0 %v355
    %511 = vmatprep.subr.mxu0 0.0
    %512 = vmatpush1.msra.mxu0 %v356
    %513 = vmatprep.subr.mxu0 0.0
    %514 = vmatpush1.msra.mxu0 %v357
    %515 = vmatprep.subr.mxu0 0.0
    %516 = vmatpush1.msra.mxu0 %v358
    %517 = vmatprep.subr.mxu0 0.0
    %518 = vmatpush1.msra.mxu0 %v359
    %519 = vmatprep.subr.mxu0 0.0
    %520 = vmatpush1.msra.mxu0 %v360
    %521 = vmatprep.subr.mxu0 0.0
    %522 = vmatpush1.msra.mxu0 %v361
    %523 = vmatprep.subr.mxu0 0.0
    %524 = vmatpush1.msra.mxu0 %v362
    %525 = vmatprep.subr.mxu0 0.0
    %526 = vmatpush1.msra.mxu0 %v363
    %527 = vmatprep.subr.mxu0 0.0
    %528 = vmatpush1.msra.mxu0 %v364
    %529 = vmatprep.subr.mxu0 0.0
    %530 = vmatpush1.msra.mxu0 %v365
    %531 = vmatprep.subr.mxu0 0.0
    %532 = vmatpush1.msra.mxu0 %v366
    %533 = vmatprep.mubr.f32.mxu0 %v291
    %534 = vmatmul.mubr.f32.gmra.mrb[0].mxu0 %v278
    %v535 = vpop.f32.mrb[0].mxu0
    %v536 = vadd.f32 %v466, %v535
    %v537 = vpop.f32.mrb[0].mxu0
    %538 = vdwg.mxu0
    %539 = vmatprep.subr.mxu0 0.0
    %540 = vmatpush1.msra.mxu0 %v367
    %541 = vmatprep.subr.mxu0 0.0
    %542 = vmatpush1.msra.mxu0 %v368
    %543 = vmatprep.subr.mxu0 0.0
    %544 = vmatpush1.msra.mxu0 %v369
    %545 = vmatprep.subr.mxu0 0.0
    %546 = vmatpush1.msra.mxu0 %v370
    %547 = vmatprep.subr.mxu0 0.0
    %548 = vmatpush1.msra.mxu0 %v371
    %549 = vmatprep.subr.mxu0 0.0
    %550 = vmatpush1.msra.mxu0 %v372
    %551 = vmatprep.subr.mxu0 0.0
    %552 = vmatpush1.msra.mxu0 %v373
    %553 = vmatprep.subr.mxu0 0.0
    %554 = vmatpush1.msra.mxu0 %v374
    %555 = vmatprep.subr.mxu0 0.0
    %556 = vmatpush1.msra.mxu0 %v375
    %557 = vmatprep.subr.mxu0 0.0
    %558 = vmatpush1.msra.mxu0 %v376
    %559 = vmatprep.subr.mxu0 0.0
    %560 = vmatpush1.msra.mxu0 %v377
    %561 = vmatprep.subr.mxu0 0.0
    %562 = vmatpush1.msra.mxu0 %v378
    %563 = vmatprep.subr.mxu0 0.0
    %564 = vmatpush1.msra.mxu0 %v379
    %565 = vmatprep.subr.mxu0 0.0
    %566 = vmatpush1.msra.mxu0 %v380
    %567 = vmatprep.subr.mxu0 0.0
    %568 = vmatpush1.msra.mxu0 %v381
    %569 = vmatprep.subr.mxu0 0.0
    %570 = vmatpush1.msra.mxu0 %v382
    %571 = vmatprep.subr.mxu0 0.0
    %572 = vmatpush1.msra.mxu0 %v383
    %573 = vmatprep.subr.mxu0 0.0
    %574 = vmatpush1.msra.mxu0 %v384
    %575 = vmatprep.subr.mxu0 0.0
    %576 = vmatpush1.msra.mxu0 %v385
    %577 = vmatprep.subr.mxu0 0.0
    %578 = vmatpush1.msra.mxu0 %v386
    %579 = vmatprep.subr.mxu0 0.0
    %580 = vmatpush1.msra.mxu0 %v387
    %581 = vmatprep.subr.mxu0 0.0
    %582 = vmatpush1.msra.mxu0 %v388
    %583 = vmatprep.subr.mxu0 0.0
    %584 = vmatpush1.msra.mxu0 %v389
    %585 = vmatprep.subr.mxu0 0.0
    %586 = vmatpush1.msra.mxu0 %v390
    %587 = vmatprep.subr.mxu0 0.0
    %588 = vmatpush1.msra.mxu0 %v391
    %589 = vmatprep.subr.mxu0 0.0
    %590 = vmatpush1.msra.mxu0 %v392
    %591 = vmatprep.subr.mxu0 0.0
    %592 = vmatpush1.msra.mxu0 %v393
    %593 = vmatprep.subr.mxu0 0.0
    %594 = vmatpush1.msra.mxu0 %v394
    %595 = vmatprep.subr.mxu0 0.0
    %596 = vmatpush1.msra.mxu0 %v395
    %597 = vmatprep.subr.mxu0 0.0
    %598 = vmatpush1.msra.mxu0 %v396
    %599 = vmatprep.subr.mxu0 0.0
    %600 = vmatpush1.msra.mxu0 %v397
    %601 = vmatprep.subr.mxu0 0.0
    %602 = vmatpush1.msra.mxu0 %v398
    %603 = vmatprep.mubr.f32.mxu0 %v298
    %604 = vmatmul.mubr.f32.gmra.mrb[0].mxu0 %v299
    %v605 = vpop.f32.mrb[0].mxu0
    %v606 = vadd.f32 %v536, %v605
    %v607 = vpop.f32.mrb[0].mxu0
    %608 = vdwg.mxu0
    %609 = vst [vmem:[#allocation8] sm:$0x3] %v606
    // Predicated region
    $region34: #{tpu_custom_call.1} parent=1 // pred_check
      _
    $region35: #{tpu_custom_call.1} parent=1 // pred_check_branch
      %611 = sbr.rel (0) target = $region37
    $region36: #{tpu_custom_call.1} parent=1 // pred_region
      %s613 = ssub.s32 32, 32
      %614 = vsyncadd [#allocation4], %s613
      %s616 = sshll.u32 [#allocation8], 4
      %s617 = int_to_ptr.vmem [resolvable:$true] %s616
      %619 = dma.vmem_to_hbm [thread:$0]  %s617, 32, %s5, [#allocation4]
    $region37: #{tpu_custom_call.1} parent=1 // pred_fallthru
      _
    // Predicated region
    $region38: #{tpu_custom_call.1} parent=1 // pred_check
      _
    $region39: #{tpu_custom_call.1} parent=1 // pred_check_branch
      %621 = sbr.rel (0) target = $region41
    $region40: #{tpu_custom_call.1} parent=1 // pred_region
      %622 = dma.done [#allocation4], 32
    $region41: #{tpu_custom_call.1} parent=1 // pred_fallthru
      _
    %623 = vsyncpa [#allocation3], 1
    %624 = vsyncpa [#allocation6], 1
    %625 = vsyncpa [#allocation4], 1

</llo_original>
